<compile_context>
chip_gen: v7x
topology: tpu7x:2x2x1
jax: 0.10.0
libtpu: 0.0.40
codegen_flags: <defaults>
</compile_context>

<pallas_src>
import functools

import jax
import jax.numpy as jnp
from jax.experimental import pallas as pl
from jax.experimental.pallas import tpu as pltpu

PACK = 16              # batch elements packed along the 128-lane axis
FPAD = 8               # per-element feature width (every layer padded to 8)
LANES = PACK * FPAD    # 128


def _sigmoid(z):
    # One EUP op per value (tanh) instead of exp + full-precision divide.
    return 0.5 * jnp.tanh(0.5 * z) + 0.5


def _mlp_kernel(w12_ref, b12_ref, w3_ref, b3_ref, x_ref, o_ref):
    # x_ref: (rows, 128) -- 16 interleaved batch elements per sublane-row.
    h = x_ref[...]
    h = _sigmoid(jnp.dot(h, w12_ref[0], preferred_element_type=jnp.float32) + b12_ref[0])
    h = _sigmoid(jnp.dot(h, w12_ref[1], preferred_element_type=jnp.float32) + b12_ref[1])
    z = jnp.dot(h, w3_ref[...], preferred_element_type=jnp.float32) + b3_ref[...]
    o_ref[...] = _sigmoid(z)                     # (rows, 16): one lane per batch element


def pack_params(w1, b1, w2, b2, w3, b3):
    """Pack PyTorch-layout weights ((out,in)) / biases ((out,)) for the interleaved kernel.

    Returns (w12, b12, w3big, b3big):
      w12  : (2,128,128) block-diagonal weights for layers 1 and 2 (16 copies each)
      b12  : (2,1,128)   per-lane biases for layers 1 and 2
      w3big: (128,16)    layer-3 weights mapping lanes 8j..8j+7 -> lane j
      b3big: (1,16)      layer-3 bias
    The zero padding of each 8x8 block is required for correctness (dead lanes stay inert).
    """
    def pad_block(w, fin, fout):
        assert w.shape == (fout, fin)
        blk = jnp.zeros((FPAD, FPAD), jnp.float32).at[:fout, :fin].set(w)
        return blk.T                              # (in, out) so that h @ blk == h @ W.T

    eye = jnp.eye(PACK, dtype=jnp.float32)
    w12 = jnp.stack([jnp.kron(eye, pad_block(w1, 8, 6)),
                     jnp.kron(eye, pad_block(w2, 6, 4))])           # (2,128,128)
    b12 = jnp.stack([jnp.tile(jnp.zeros((FPAD,), jnp.float32).at[:6].set(b1), PACK),
                     jnp.tile(jnp.zeros((FPAD,), jnp.float32).at[:4].set(b2), PACK)])
    b12 = b12.reshape(2, 1, LANES)

    w3col = jnp.zeros((FPAD, 1), jnp.float32).at[:4, 0].set(w3[0])  # (8,1)
    w3big = jnp.kron(eye, w3col)                                    # (128,16)
    b3big = jnp.full((1, PACK), b3[0], jnp.float32)
    return w12, b12, w3big, b3big


def _round_up(n, m):
    return ((n + m - 1) // m) * m


@functools.partial(jax.jit, static_argnames=("tile_elems",))
def mlp_forward(x, packed, *, tile_elems=131072):
    """x: (N, 8) float32.  packed: output of pack_params().  Returns (N, 1) float32.

    tile_elems = batch elements per grid step (multiple of 128).  Default 128K keeps the
    per-step VMEM footprint ~25-30 MiB (fits the 48 MiB budget below on all generations,
    including v7x's 64 MiB/TC); sweep 32K-256K per generation if tuning.
    """
    w12, b12, w3big, b3big = packed
    n = x.shape[0]
    assert x.shape == (n, 8)
    assert tile_elems % LANES == 0

    # Pad the batch only up to a multiple of 128 (bounded waste), NOT to a tile multiple.
    n_pad = _round_up(n, LANES)
    x = x.astype(jnp.float32)
    if n_pad != n:
        x = jnp.pad(x, ((0, n_pad - n), (0, 0)))
    # Free reshape of the contiguous row-major array: no transpose / extra HBM pass.
    xr = x.reshape(n_pad // PACK, LANES)
    rows = xr.shape[0]                                   # multiple of 8

    rows_tile = min(tile_elems // PACK, rows)
    # Keep >=2 grid steps when there is enough work so the v7x megacore can split it.
    rows_tile = min(rows_tile, max(8, _round_up((rows + 1) // 2, 8)))
    grid = (pl.cdiv(rows, rows_tile),)                   # last block may overhang: padded
                                                         # lanes/rows never mix with real data.

    out = pl.pallas_call(
        _mlp_kernel,
        out_shape=jax.ShapeDtypeStruct((rows, PACK), jnp.float32),
        grid_spec=pltpu.PrefetchScalarGridSpec(
            num_scalar_prefetch=0,
            grid=grid,
            in_specs=[
                # Resident weights/biases: constant index_map -> fetched once, stay in VMEM.
                pl.BlockSpec((2, LANES, LANES), lambda i: (0, 0, 0)),
                pl.BlockSpec((2, 1, LANES), lambda i: (0, 0, 0)),
                pl.BlockSpec((LANES, PACK), lambda i: (0, 0)),
                pl.BlockSpec((1, PACK), lambda i: (0, 0)),
                # Streamed activations: lane-dense blocks, double-buffered by the pipeline.
                # TODO(synk): use pipeline_mode=pl.Buffered(3) if a profile shows exposed x DMA.
                pl.BlockSpec((rows_tile, LANES), lambda i: (i, 0)),
            ],
            out_specs=pl.BlockSpec((rows_tile, PACK), lambda i: (i, 0)),
        ),
        compiler_params=pltpu.CompilerParams(
            dimension_semantics=("parallel",),
            vmem_limit_bytes=48 * 1024 * 1024,
        ),
    )(w12, b12, w3big, b3big, xr)

    # (rows,16) -> (n_pad,) is a free contiguous reshape; slice off the batch padding.
    return out.reshape(n_pad)[:n].reshape(n, 1)


def init_params(key):
    """Deterministic init mirroring nn.Linear defaults: l1(8,6), l2(6,4), l3(4,1)."""
    ks = jax.random.split(key, 6)

    def linear(kw, kb, fan_in, fan_out):
        bound = 1.0 / jnp.sqrt(jnp.float32(fan_in))
        w = jax.random.uniform(kw, (fan_out, fan_in), jnp.float32, -bound, bound)
        b = jax.random.uniform(kb, (fan_out,), jnp.float32, -bound, bound)
        return w, b

    w1, b1 = linear(ks[0], ks[1], 8, 6)
    w2, b2 = linear(ks[2], ks[3], 6, 4)
    w3, b3 = linear(ks[4], ks[5], 4, 1)
    return dict(w1=w1, b1=b1, w2=w2, b2=b2, w3=w3, b3=b3)


def mlp_reference(x, params):
    """Exact-f32 reference (pure VPU math, no matmul precision ambiguity).
    PyTorch semantics: y = sigmoid(x @ W.T + b) per layer."""
    h = x
    for w, b in ((params["w1"], params["b1"]),
                 (params["w2"], params["b2"]),
                 (params["w3"], params["b3"])):
        z = jnp.sum(h[:, None, :] * w[None, :, :], axis=-1) + b
        h = jax.nn.sigmoid(z)
    return h


if __name__ == "__main__":
    key = jax.random.PRNGKey(0)
    kx, kp = jax.random.split(key)
    params = init_params(kp)
    packed = pack_params(params["w1"], params["b1"], params["w2"], params["b2"],
                         params["w3"], params["b3"])

    # Case 1: small batch (single grid step, default tile).
    # Case 2: N not a multiple of 128 and N > tile (exercises batch padding and the
    #         multi-step pipelined grid), per the review's correctness note.
    for n, tile in ((16, 131072), (300, 128)):
        x = jax.random.normal(jax.random.fold_in(kx, n), (n, 8), jnp.float32)
        y = mlp_forward(x, packed, tile_elems=tile)
        jax.block_until_ready(y)
        ref = mlp_reference(x, params)
        assert y.shape == (n, 1)
        # Tolerance covers the MXU's f32 pass decomposition; any packing/layout bug would
        # be off by O(0.1) on these sigmoid outputs.
        assert jnp.allclose(y, ref, atol=5e-3, rtol=0.0), (
            f"mismatch vs reference (n={n}): max abs err "
            f"{float(jnp.max(jnp.abs(y - ref))):.3e}")
    print("KERNEL_OK")
</pallas_src>

<mosaic_0001>
module attributes {stable_mosaic.version = 11 : i64} {
  func.func @_mlp_kernel(%arg0: i32, %arg1: memref<2x128x128xf32, #tpu.memory_space<vmem>>, %arg2: memref<2x1x128xf32, #tpu.memory_space<vmem>>, %arg3: memref<128x16xf32, #tpu.memory_space<vmem>>, %arg4: memref<1x16xf32, #tpu.memory_space<vmem>>, %arg5: memref<8x128xf32, #tpu.memory_space<vmem>>, %arg6: memref<8x16xf32, #tpu.memory_space<vmem>>) attributes {dimension_semantics = [#tpu.dimension_semantics<parallel>], iteration_bounds = array<i64: 1>, scalar_prefetch = 0 : i64, scratch_operands = 0 : i64, tpu.core_type = #tpu.core_type<tc>, window_params = [{pipeline_mode = #tpu.pipeline_mode<synchronous>, transform_indices = @transform_0, window_bounds = array<i64: 2, 128, 128>}, {pipeline_mode = #tpu.pipeline_mode<synchronous>, transform_indices = @transform_1, window_bounds = array<i64: 2, 1, 128>}, {pipeline_mode = #tpu.pipeline_mode<synchronous>, transform_indices = @transform_2, window_bounds = array<i64: 128, 16>}, {pipeline_mode = #tpu.pipeline_mode<synchronous>, transform_indices = @transform_3, window_bounds = array<i64: 1, 16>}, {transform_indices = @transform_4, window_bounds = array<i64: 8, 128>}, {transform_indices = @transform_5, window_bounds = array<i64: 8, 16>}]} {
    %c0 = arith.constant 0 : index
    %c0_0 = arith.constant 0 : index
    %0 = vector.load %arg5[%c0, %c0_0] : memref<8x128xf32, #tpu.memory_space<vmem>>, vector<8x128xf32>
    %c0_1 = arith.constant 0 : index
    %c0_2 = arith.constant 0 : index
    %c0_3 = arith.constant 0 : index
    %1 = vector.load %arg1[%c0_1, %c0_2, %c0_3] : memref<2x128x128xf32, #tpu.memory_space<vmem>>, vector<1x128x128xf32>
    %2 = vector.shape_cast %1 : vector<1x128x128xf32> to vector<128x128xf32>
    %cst = arith.constant dense<0.000000e+00> : vector<8x128xf32>
    %3 = tpu.matmul %0, %2, %cst {dimension_numbers = #tpu.dot_dimension_numbers<[1], [0], [0], [1], [0, 0, 1, 1], [], []>} : vector<8x128xf32>, vector<128x128xf32>, vector<8x128xf32> -> vector<8x128xf32>
    %c0_4 = arith.constant 0 : index
    %c0_5 = arith.constant 0 : index
    %c0_6 = arith.constant 0 : index
    %4 = vector.load %arg2[%c0_4, %c0_5, %c0_6] : memref<2x1x128xf32, #tpu.memory_space<vmem>>, vector<1x1x128xf32>
    %5 = vector.shape_cast %4 : vector<1x1x128xf32> to vector<1x128xf32>
    %6 = vector.broadcast %5 : vector<1x128xf32> to vector<8x128xf32>
    %7 = arith.addf %3, %6 : vector<8x128xf32>
    %cst_7 = arith.constant 5.000000e-01 : f32
    %8 = vector.broadcast %cst_7 : f32 to vector<8x128xf32>
    %9 = arith.mulf %8, %7 : vector<8x128xf32>
    %10 = math.tanh %9 : vector<8x128xf32>
    %cst_8 = arith.constant 5.000000e-01 : f32
    %11 = vector.broadcast %cst_8 : f32 to vector<8x128xf32>
    %12 = arith.mulf %11, %10 : vector<8x128xf32>
    %cst_9 = arith.constant 5.000000e-01 : f32
    %13 = vector.broadcast %cst_9 : f32 to vector<8x128xf32>
    %14 = arith.addf %12, %13 : vector<8x128xf32>
    %c1 = arith.constant 1 : index
    %c0_10 = arith.constant 0 : index
    %c0_11 = arith.constant 0 : index
    %15 = vector.load %arg1[%c1, %c0_10, %c0_11] : memref<2x128x128xf32, #tpu.memory_space<vmem>>, vector<1x128x128xf32>
    %16 = vector.shape_cast %15 : vector<1x128x128xf32> to vector<128x128xf32>
    %cst_12 = arith.constant dense<0.000000e+00> : vector<8x128xf32>
    %17 = tpu.matmul %14, %16, %cst_12 {dimension_numbers = #tpu.dot_dimension_numbers<[1], [0], [0], [1], [0, 0, 1, 1], [], []>} : vector<8x128xf32>, vector<128x128xf32>, vector<8x128xf32> -> vector<8x128xf32>
    %c1_13 = arith.constant 1 : index
    %c0_14 = arith.constant 0 : index
    %c0_15 = arith.constant 0 : index
    %18 = vector.load %arg2[%c1_13, %c0_14, %c0_15] : memref<2x1x128xf32, #tpu.memory_space<vmem>>, vector<1x1x128xf32>
    %19 = vector.shape_cast %18 : vector<1x1x128xf32> to vector<1x128xf32>
    %20 = vector.broadcast %19 : vector<1x128xf32> to vector<8x128xf32>
    %21 = arith.addf %17, %20 : vector<8x128xf32>
    %cst_16 = arith.constant 5.000000e-01 : f32
    %22 = vector.broadcast %cst_16 : f32 to vector<8x128xf32>
    %23 = arith.mulf %22, %21 : vector<8x128xf32>
    %24 = math.tanh %23 : vector<8x128xf32>
    %cst_17 = arith.constant 5.000000e-01 : f32
    %25 = vector.broadcast %cst_17 : f32 to vector<8x128xf32>
    %26 = arith.mulf %25, %24 : vector<8x128xf32>
    %cst_18 = arith.constant 5.000000e-01 : f32
    %27 = vector.broadcast %cst_18 : f32 to vector<8x128xf32>
    %28 = arith.addf %26, %27 : vector<8x128xf32>
    %c0_19 = arith.constant 0 : index
    %c0_20 = arith.constant 0 : index
    %29 = vector.load %arg3[%c0_19, %c0_20] : memref<128x16xf32, #tpu.memory_space<vmem>>, vector<128x16xf32>
    %cst_21 = arith.constant dense<0.000000e+00> : vector<8x16xf32>
    %30 = tpu.matmul %28, %29, %cst_21 {dimension_numbers = #tpu.dot_dimension_numbers<[1], [0], [0], [1], [0, 0, 1, 1], [], []>} : vector<8x128xf32>, vector<128x16xf32>, vector<8x16xf32> -> vector<8x16xf32>
    %c0_22 = arith.constant 0 : index
    %c0_23 = arith.constant 0 : index
    %31 = vector.load %arg4[%c0_22, %c0_23] : memref<1x16xf32, #tpu.memory_space<vmem>>, vector<1x16xf32>
    %32 = vector.broadcast %31 : vector<1x16xf32> to vector<8x16xf32>
    %33 = arith.addf %30, %32 : vector<8x16xf32>
    %cst_24 = arith.constant 5.000000e-01 : f32
    %34 = vector.broadcast %cst_24 : f32 to vector<8x16xf32>
    %35 = arith.mulf %34, %33 : vector<8x16xf32>
    %36 = math.tanh %35 : vector<8x16xf32>
    %cst_25 = arith.constant 5.000000e-01 : f32
    %37 = vector.broadcast %cst_25 : f32 to vector<8x16xf32>
    %38 = arith.mulf %37, %36 : vector<8x16xf32>
    %cst_26 = arith.constant 5.000000e-01 : f32
    %39 = vector.broadcast %cst_26 : f32 to vector<8x16xf32>
    %40 = arith.addf %38, %39 : vector<8x16xf32>
    %c0_27 = arith.constant 0 : index
    %c0_28 = arith.constant 0 : index
    %41 = vector.load %arg6[%c0_27, %c0_28] : memref<8x16xf32, #tpu.memory_space<vmem>>, vector<8x16xf32>
    tpu.vector_store %arg6[%c0_27, %c0_28], %40 {strides = array<i32>} : memref<8x16xf32, #tpu.memory_space<vmem>>, vector<8x16xf32>,
    return
  }
  func.func @transform_0(%arg0: i32) -> (i32, i32, i32) {
    %c0_i32 = arith.constant 0 : i32
    %c0_i32_0 = arith.constant 0 : i32
    %c0_i32_1 = arith.constant 0 : i32
    %c0_i32_2 = arith.constant 0 : i32
    return %c0_i32, %c0_i32_0, %c0_i32_1 : i32, i32, i32
  }
  func.func @transform_1(%arg0: i32) -> (i32, i32, i32) {
    %c0_i32 = arith.constant 0 : i32
    %c0_i32_0 = arith.constant 0 : i32
    %c0_i32_1 = arith.constant 0 : i32
    %c0_i32_2 = arith.constant 0 : i32
    return %c0_i32, %c0_i32_0, %c0_i32_1 : i32, i32, i32
  }
  func.func @transform_2(%arg0: i32) -> (i32, i32) {
    %c0_i32 = arith.constant 0 : i32
    %c0_i32_0 = arith.constant 0 : i32
    %c0_i32_1 = arith.constant 0 : i32
    return %c0_i32, %c0_i32_0 : i32, i32
  }
  func.func @transform_3(%arg0: i32) -> (i32, i32) {
    %c0_i32 = arith.constant 0 : i32
    %c0_i32_0 = arith.constant 0 : i32
    %c0_i32_1 = arith.constant 0 : i32
    return %c0_i32, %c0_i32_0 : i32, i32
  }
  func.func @transform_4(%arg0: i32) -> (i32, i32) {
    %c0_i32 = arith.constant 0 : i32
    %c0_i32_0 = arith.constant 0 : i32
    return %arg0, %c0_i32 : i32, i32
  }
  func.func @transform_5(%arg0: i32) -> (i32, i32) {
    %c0_i32 = arith.constant 0 : i32
    %c0_i32_0 = arith.constant 0 : i32
    return %arg0, %c0_i32 : i32, i32
  }
}

</mosaic_0001>

<llo_original>
// kernel: mlp_forward.1
$region0: #{mlp_forward.1}
  #allocation0 [shape = 'u32[]', space=smem, size = 0x4, offset = 0x4, fixed_abs, tag = 'smem constant byte address 0x4 - core index']
  #allocation1 [shape = 'u32[144,128]{1,0:T(1,128)}', space=vmem, size = 0x12000, scoped, tag = 'internal scratch']
  %s0 = inlined_call_operand.vmem [shape: f32[2,128,128], index: 0, kind: input, shape index: {}]
  %s1 = inlined_call_operand.vmem [shape: f32[2,1,128], index: 1, kind: input, shape index: {}]
  %s2 = inlined_call_operand.vmem [shape: f32[128,16], index: 2, kind: input, shape index: {}]
  %s3 = inlined_call_operand.vmem [shape: f32[1,16], index: 3, kind: input, shape index: {}]
  %s4 = inlined_call_operand.vmem [shape: f32[8,128], index: 4, kind: input, shape index: {}]
  %s5 = inlined_call_operand.vmem [shape: f32[8,16], index: 5, kind: output, shape index: {}]
  %s6 = sld [smem:[#allocation0]]
  $region30: #{mlp_forward.1} parent=0
    _
  %s8 = ssub.s32 1, %s6
  %s9 = scalar_select 0, %s8, %s6
  // Predicated region
  $region2: #{mlp_forward.1} parent=0 // pred_check
    _
  $region3: #{mlp_forward.1} parent=0 // pred_check_branch
    %11 = sbr.rel (0) target = $region5
  $region4: #{mlp_forward.1} parent=0 // pred_region
    _
  $region5: #{mlp_forward.1} parent=0 // pred_fallthru
    _
  // Predicated region
  $region6: #{mlp_forward.1} parent=0 // pred_check
    _
  $region7: #{mlp_forward.1} parent=0 // pred_check_branch
    %13 = sbr.rel (0) target = $region9
  $region8: #{mlp_forward.1} parent=0 // pred_region
    _
  $region9: #{mlp_forward.1} parent=0 // pred_fallthru
    _
  // Predicated region
  $region10: #{mlp_forward.1} parent=0 // pred_check
    _
  $region11: #{mlp_forward.1} parent=0 // pred_check_branch
    %15 = sbr.rel (0) target = $region13
  $region12: #{mlp_forward.1} parent=0 // pred_region
    _
  $region13: #{mlp_forward.1} parent=0 // pred_fallthru
    _
  // Predicated region
  $region14: #{mlp_forward.1} parent=0 // pred_check
    _
  $region15: #{mlp_forward.1} parent=0 // pred_check_branch
    %17 = sbr.rel (0) target = $region17
  $region16: #{mlp_forward.1} parent=0 // pred_region
    _
  $region17: #{mlp_forward.1} parent=0 // pred_fallthru
    _
  // Predicated region
  $region18: #{mlp_forward.1} parent=0 // pred_check
    _
  $region19: #{mlp_forward.1} parent=0 // pred_check_branch
    %19 = sbr.rel (0) target = $region21
  $region20: #{mlp_forward.1} parent=0 // pred_region
    _
  $region21: #{mlp_forward.1} parent=0 // pred_fallthru
    _
  %v20 = vld [vmem:[%s4] sm:$0xff]
  %v21 = vld [vmem:[%s0] sm:$0xff]
  %v22 = vld [vmem:[%s0 + $0x8] sm:$0xff]
  %v23 = vld [vmem:[%s0 + $0x10] sm:$0xff]
  %v24 = vld [vmem:[%s0 + $0x18] sm:$0xff]
  %v25 = vld [vmem:[%s0 + $0x20] sm:$0xff]
  %v26 = vld [vmem:[%s0 + $0x28] sm:$0xff]
  %v27 = vld [vmem:[%s0 + $0x30] sm:$0xff]
  %v28 = vld [vmem:[%s0 + $0x38] sm:$0xff]
  %v29 = vld [vmem:[%s0 + $0x40] sm:$0xff]
  %v30 = vld [vmem:[%s0 + $0x48] sm:$0xff]
  %v31 = vld [vmem:[%s0 + $0x50] sm:$0xff]
  %v32 = vld [vmem:[%s0 + $0x58] sm:$0xff]
  %v33 = vld [vmem:[%s0 + $0x60] sm:$0xff]
  %v34 = vld [vmem:[%s0 + $0x68] sm:$0xff]
  %v35 = vld [vmem:[%s0 + $0x70] sm:$0xff]
  %v36 = vld [vmem:[%s0 + $0x78] sm:$0xff]
  %v37 = vld [vmem:[%s1] sm:$0x1]
  %v39 = vlaneseq
  %v40 = vshrl.u32 %v39, 7
  %v41 = vsub.s32 0, %v40
  %v42 = vrot.slane %v37, %v41
  %44 = vmatprep.subr.mxu0 0.0
  %45 = vmatpush1.msra.mxu0 %v21
  %46 = vmatprep.subr.mxu0 0.0
  %47 = vmatpush1.msra.mxu0 %v22
  %48 = vmatprep.subr.mxu0 0.0
  %49 = vmatpush1.msra.mxu0 %v23
  %50 = vmatprep.subr.mxu0 0.0
  %51 = vmatpush1.msra.mxu0 %v24
  %52 = vmatprep.subr.mxu0 0.0
  %53 = vmatpush1.msra.mxu0 %v25
  %54 = vmatprep.subr.mxu0 0.0
  %55 = vmatpush1.msra.mxu0 %v26
  %56 = vmatprep.subr.mxu0 0.0
  %57 = vmatpush1.msra.mxu0 %v27
  %58 = vmatprep.subr.mxu0 0.0
  %59 = vmatpush1.msra.mxu0 %v28
  %60 = vmatprep.subr.mxu0 0.0
  %61 = vmatpush1.msra.mxu0 %v29
  %62 = vmatprep.subr.mxu0 0.0
  %63 = vmatpush1.msra.mxu0 %v30
  %64 = vmatprep.subr.mxu0 0.0
  %65 = vmatpush1.msra.mxu0 %v31
  %66 = vmatprep.subr.mxu0 0.0
  %67 = vmatpush1.msra.mxu0 %v32
  %68 = vmatprep.subr.mxu0 0.0
  %69 = vmatpush1.msra.mxu0 %v33
  %70 = vmatprep.subr.mxu0 0.0
  %71 = vmatpush1.msra.mxu0 %v34
  %72 = vmatprep.subr.mxu0 0.0
  %73 = vmatpush1.msra.mxu0 %v35
  %74 = vmatprep.subr.mxu0 0.0
  %75 = vmatpush1.msra.mxu0 %v36
  %76 = vmatprep.subr.mxu0 0.0
  %77 = vmatpush1.msra.mxu0 0.0
  %78 = vmatprep.subr.mxu0 0.0
  %79 = vmatpush1.msra.mxu0 0.0
  %80 = vmatprep.subr.mxu0 0.0
  %81 = vmatpush1.msra.mxu0 0.0
  %82 = vmatprep.subr.mxu0 0.0
  %83 = vmatpush1.msra.mxu0 0.0
  %84 = vmatprep.subr.mxu0 0.0
  %85 = vmatpush1.msra.mxu0 0.0
  %86 = vmatprep.subr.mxu0 0.0
  %87 = vmatpush1.msra.mxu0 0.0
  %88 = vmatprep.subr.mxu0 0.0
  %89 = vmatpush1.msra.mxu0 0.0
  %90 = vmatprep.subr.mxu0 0.0
  %91 = vmatpush1.msra.mxu0 0.0
  %92 = vmatprep.subr.mxu0 0.0
  %93 = vmatpush1.msra.mxu0 0.0
  %94 = vmatprep.subr.mxu0 0.0
  %95 = vmatpush1.msra.mxu0 0.0
  %96 = vmatprep.subr.mxu0 0.0
  %97 = vmatpush1.msra.mxu0 0.0
  %98 = vmatprep.subr.mxu0 0.0
  %99 = vmatpush1.msra.mxu0 0.0
  %100 = vmatprep.subr.mxu0 0.0
  %101 = vmatpush1.msra.mxu0 0.0
  %102 = vmatprep.subr.mxu0 0.0
  %103 = vmatpush1.msra.mxu0 0.0
  %104 = vmatprep.subr.mxu0 0.0
  %105 = vmatpush1.msra.mxu0 0.0
  %106 = vmatprep.subr.mxu0 0.0
  %107 = vmatpush1.msra.mxu0 0.0
  %108 = vmatprep.mubr.f32.mxu0 0.0
  %109 = vmatmul.mubr.f32.gmra.mrb[0].mxu0 %v20
  %v110 = vpop.f32.mrb[0].mxu0
  %v111 = vadd.f32 %v42, %v110
  %v112 = vpop.f32.mrb[0].mxu0
  %113 = vdwg.mxu0
  %v114 = vmul.f32 %v111, 0.5
  %v115 = vtanh.pop %v114
  %v116 = vmul.f32 %v115, 0.5
  %v117 = vadd.f32 %v116, 0.5
  %s118 = scalar_lea.vmem %s0, 128
  %v119 = vld [vmem:[%s118] sm:$0xff]
  %v120 = vld [vmem:[%s118 + $0x8] sm:$0xff]
  %v121 = vld [vmem:[%s118 + $0x10] sm:$0xff]
  %v122 = vld [vmem:[%s118 + $0x18] sm:$0xff]
  %v123 = vld [vmem:[%s118 + $0x20] sm:$0xff]
  %v124 = vld [vmem:[%s118 + $0x28] sm:$0xff]
  %v125 = vld [vmem:[%s118 + $0x30] sm:$0xff]
  %v126 = vld [vmem:[%s118 + $0x38] sm:$0xff]
  %v127 = vld [vmem:[%s118 + $0x40] sm:$0xff]
  %v128 = vld [vmem:[%s118 + $0x48] sm:$0xff]
  %v129 = vld [vmem:[%s118 + $0x50] sm:$0xff]
  %v130 = vld [vmem:[%s118 + $0x58] sm:$0xff]
  %v131 = vld [vmem:[%s118 + $0x60] sm:$0xff]
  %v132 = vld [vmem:[%s118 + $0x68] sm:$0xff]
  %v133 = vld [vmem:[%s118 + $0x70] sm:$0xff]
  %v134 = vld [vmem:[%s118 + $0x78] sm:$0xff]
  %s135 = scalar_lea.vmem %s1, 1
  %v136 = vld [vmem:[%s135] sm:$0x1]
  %v138 = vlaneseq
  %v139 = vshrl.u32 %v138, 7
  %v140 = vsub.s32 0, %v139
  %v141 = vrot.slane %v136, %v140
  %143 = vmatprep.subr.mxu0 0.0
  %144 = vmatpush1.msra.mxu0 %v119
  %145 = vmatprep.subr.mxu0 0.0
  %146 = vmatpush1.msra.mxu0 %v120
  %147 = vmatprep.subr.mxu0 0.0
  %148 = vmatpush1.msra.mxu0 %v121
  %149 = vmatprep.subr.mxu0 0.0
  %150 = vmatpush1.msra.mxu0 %v122
  %151 = vmatprep.subr.mxu0 0.0
  %152 = vmatpush1.msra.mxu0 %v123
  %153 = vmatprep.subr.mxu0 0.0
  %154 = vmatpush1.msra.mxu0 %v124
  %155 = vmatprep.subr.mxu0 0.0
  %156 = vmatpush1.msra.mxu0 %v125
  %157 = vmatprep.subr.mxu0 0.0
  %158 = vmatpush1.msra.mxu0 %v126
  %159 = vmatprep.subr.mxu0 0.0
  %160 = vmatpush1.msra.mxu0 %v127
  %161 = vmatprep.subr.mxu0 0.0
  %162 = vmatpush1.msra.mxu0 %v128
  %163 = vmatprep.subr.mxu0 0.0
  %164 = vmatpush1.msra.mxu0 %v129
  %165 = vmatprep.subr.mxu0 0.0
  %166 = vmatpush1.msra.mxu0 %v130
  %167 = vmatprep.subr.mxu0 0.0
  %168 = vmatpush1.msra.mxu0 %v131
  %169 = vmatprep.subr.mxu0 0.0
  %170 = vmatpush1.msra.mxu0 %v132
  %171 = vmatprep.subr.mxu0 0.0
  %172 = vmatpush1.msra.mxu0 %v133
  %173 = vmatprep.subr.mxu0 0.0
  %174 = vmatpush1.msra.mxu0 %v134
  %175 = vmatprep.subr.mxu0 0.0
  %176 = vmatpush1.msra.mxu0 0.0
  %177 = vmatprep.subr.mxu0 0.0
  %178 = vmatpush1.msra.mxu0 0.0
  %179 = vmatprep.subr.mxu0 0.0
  %180 = vmatpush1.msra.mxu0 0.0
  %181 = vmatprep.subr.mxu0 0.0
  %182 = vmatpush1.msra.mxu0 0.0
  %183 = vmatprep.subr.mxu0 0.0
  %184 = vmatpush1.msra.mxu0 0.0
  %185 = vmatprep.subr.mxu0 0.0
  %186 = vmatpush1.msra.mxu0 0.0
  %187 = vmatprep.subr.mxu0 0.0
  %188 = vmatpush1.msra.mxu0 0.0
  %189 = vmatprep.subr.mxu0 0.0
  %190 = vmatpush1.msra.mxu0 0.0
  %191 = vmatprep.subr.mxu0 0.0
  %192 = vmatpush1.msra.mxu0 0.0
  %193 = vmatprep.subr.mxu0 0.0
  %194 = vmatpush1.msra.mxu0 0.0
  %195 = vmatprep.subr.mxu0 0.0
  %196 = vmatpush1.msra.mxu0 0.0
  %197 = vmatprep.subr.mxu0 0.0
  %198 = vmatpush1.msra.mxu0 0.0
  %199 = vmatprep.subr.mxu0 0.0
  %200 = vmatpush1.msra.mxu0 0.0
  %201 = vmatprep.subr.mxu0 0.0
  %202 = vmatpush1.msra.mxu0 0.0
  %203 = vmatprep.subr.mxu0 0.0
  %204 = vmatpush1.msra.mxu0 0.0
  %205 = vmatprep.subr.mxu0 0.0
  %206 = vmatpush1.msra.mxu0 0.0
  %207 = vmatprep.mubr.f32.mxu0 0.0
  %208 = vmatmul.mubr.f32.gmra.mrb[0].mxu0 %v117
  %v209 = vpop.f32.mrb[0].mxu0
  %v210 = vadd.f32 %v141, %v209
  %v211 = vpop.f32.mrb[0].mxu0
  %212 = vdwg.mxu0
  %v213 = vmul.f32 %v210, 0.5
  %v214 = vtanh.pop %v213
  %v215 = vmul.f32 %v214, 0.5
  %v216 = vadd.f32 %v215, 0.5
  %v217 = vld [vmem:[%s2] sm:$0xff]
  %v218 = vld [vmem:[%s2 + $0x8] sm:$0xff]
  %v219 = vld [vmem:[%s2 + $0x10] sm:$0xff]
  %v220 = vld [vmem:[%s2 + $0x18] sm:$0xff]
  %v221 = vld [vmem:[%s2 + $0x20] sm:$0xff]
  %v222 = vld [vmem:[%s2 + $0x28] sm:$0xff]
  %v223 = vld [vmem:[%s2 + $0x30] sm:$0xff]
  %v224 = vld [vmem:[%s2 + $0x38] sm:$0xff]
  %v225 = vld [vmem:[%s2 + $0x40] sm:$0xff]
  %v226 = vld [vmem:[%s2 + $0x48] sm:$0xff]
  %v227 = vld [vmem:[%s2 + $0x50] sm:$0xff]
  %v228 = vld [vmem:[%s2 + $0x58] sm:$0xff]
  %v229 = vld [vmem:[%s2 + $0x60] sm:$0xff]
  %v230 = vld [vmem:[%s2 + $0x68] sm:$0xff]
  %v231 = vld [vmem:[%s2 + $0x70] sm:$0xff]
  %v232 = vld [vmem:[%s2 + $0x78] sm:$0xff]
  %v233 = vld [vmem:[%s3] sm:$0x1]
  %v235 = vlaneseq
  %v236 = vshrl.u32 %v235, 7
  %v237 = vsub.s32 0, %v236
  %v238 = vrot.slane %v233, %v237
  %240 = vmatprep.subr.mxu0 0.0
  %241 = vmatpush1.msra.mxu0 %v217
  %242 = vmatprep.subr.mxu0 0.0
  %243 = vmatpush1.msra.mxu0 %v218
  %244 = vmatprep.subr.mxu0 0.0
  %245 = vmatpush1.msra.mxu0 %v219
  %246 = vmatprep.subr.mxu0 0.0
  %247 = vmatpush1.msra.mxu0 %v220
  %248 = vmatprep.subr.mxu0 0.0
  %249 = vmatpush1.msra.mxu0 %v221
  %250 = vmatprep.subr.mxu0 0.0
  %251 = vmatpush1.msra.mxu0 %v222
  %252 = vmatprep.subr.mxu0 0.0
  %253 = vmatpush1.msra.mxu0 %v223
  %254 = vmatprep.subr.mxu0 0.0
  %255 = vmatpush1.msra.mxu0 %v224
  %256 = vmatprep.subr.mxu0 0.0
  %257 = vmatpush1.msra.mxu0 %v225
  %258 = vmatprep.subr.mxu0 0.0
  %259 = vmatpush1.msra.mxu0 %v226
  %260 = vmatprep.subr.mxu0 0.0
  %261 = vmatpush1.msra.mxu0 %v227
  %262 = vmatprep.subr.mxu0 0.0
  %263 = vmatpush1.msra.mxu0 %v228
  %264 = vmatprep.subr.mxu0 0.0
  %265 = vmatpush1.msra.mxu0 %v229
  %266 = vmatprep.subr.mxu0 0.0
  %267 = vmatpush1.msra.mxu0 %v230
  %268 = vmatprep.subr.mxu0 0.0
  %269 = vmatpush1.msra.mxu0 %v231
  %270 = vmatprep.subr.mxu0 0.0
  %271 = vmatpush1.msra.mxu0 %v232
  %272 = vmatprep.subr.mxu0 0.0
  %273 = vmatpush1.msra.mxu0 0.0
  %274 = vmatprep.subr.mxu0 0.0
  %275 = vmatpush1.msra.mxu0 0.0
  %276 = vmatprep.subr.mxu0 0.0
  %277 = vmatpush1.msra.mxu0 0.0
  %278 = vmatprep.subr.mxu0 0.0
  %279 = vmatpush1.msra.mxu0 0.0
  %280 = vmatprep.subr.mxu0 0.0
  %281 = vmatpush1.msra.mxu0 0.0
  %282 = vmatprep.subr.mxu0 0.0
  %283 = vmatpush1.msra.mxu0 0.0
  %284 = vmatprep.subr.mxu0 0.0
  %285 = vmatpush1.msra.mxu0 0.0
  %286 = vmatprep.subr.mxu0 0.0
  %287 = vmatpush1.msra.mxu0 0.0
  %288 = vmatprep.subr.mxu0 0.0
  %289 = vmatpush1.msra.mxu0 0.0
  %290 = vmatprep.subr.mxu0 0.0
  %291 = vmatpush1.msra.mxu0 0.0
  %292 = vmatprep.subr.mxu0 0.0
  %293 = vmatpush1.msra.mxu0 0.0
  %294 = vmatprep.subr.mxu0 0.0
  %295 = vmatpush1.msra.mxu0 0.0
  %296 = vmatprep.subr.mxu0 0.0
  %297 = vmatpush1.msra.mxu0 0.0
  %298 = vmatprep.subr.mxu0 0.0
  %299 = vmatpush1.msra.mxu0 0.0
  %300 = vmatprep.subr.mxu0 0.0
  %301 = vmatpush1.msra.mxu0 0.0
  %302 = vmatprep.subr.mxu0 0.0
  %303 = vmatpush1.msra.mxu0 0.0
  %304 = vmatprep.mubr.f32.mxu0 0.0
  %305 = vmatmul.mubr.f32.gmra.mrb[0].mxu0 %v216
  %v306 = vpop.f32.mrb[0].mxu0
  %v307 = vadd.f32 %v238, %v306
  %v308 = vpop.f32.mrb[0].mxu0
  %309 = vdwg.mxu0
  %v310 = vmul.f32 %v307, 0.5
  %v311 = vtanh.pop %v310
  %v312 = vmul.f32 %v311, 0.5
  %v313 = vadd.f32 %v312, 0.5
  %vm314 = vcmask 130048
  %315 = vst.msk [vmem:[%s5] sm:$0xff] %vm314, %v313
  // Predicated region
  $region22: #{mlp_forward.1} parent=0 // pred_check
    _
  $region23: #{mlp_forward.1} parent=0 // pred_check_branch
    %317 = sbr.rel (0) target = $region25
  $region24: #{mlp_forward.1} parent=0 // pred_region
    _
  $region25: #{mlp_forward.1} parent=0 // pred_fallthru
    _
  // Predicated region
  $region26: #{mlp_forward.1} parent=0 // pred_check
    _
  $region27: #{mlp_forward.1} parent=0 // pred_check_branch
    %319 = sbr.rel (0) target = $region29
  $region28: #{mlp_forward.1} parent=0 // pred_region
    _
  $region29: #{mlp_forward.1} parent=0 // pred_fallthru
    _

</llo_original>
